<compile_context>
chip_gen: v5e
topology: v5e:2x2
jax: 0.10.0
libtpu: 0.0.40
codegen_flags: <defaults>
</compile_context>

<pallas_src>
import jax
import jax.numpy as jnp
from jax.experimental import pallas as pl
from jax.experimental.pallas import tpu as pltpu


# Rough count of live (TB, C_pad) f32 temporaries inside the kernel
# (casted logits, shift, exp, masked-exp, casted labels, labels*logits).
_NUM_F32_TEMPS = 6


def _vmem_capacity_bytes() -> int:
    """Per-core VMEM capacity (128 MiB on v5e/v6e, 64 MiB on v7x)."""
    try:
        info = pltpu.get_tpu_info()
        cap = getattr(info, "vmem_capacity_bytes", None)
        if cap:
            return int(cap)
    except Exception:
        pass
    return 64 * 1024 * 1024  # conservative default (v7x per-TC VMEM)


def _round_up(x: int, m: int) -> int:
    return ((x + m - 1) // m) * m


def _per_row_bytes(C: int, logits_itemsize: int, labels_itemsize: int) -> int:
    c_pad = _round_up(C, 128)
    # 2x double-buffered input tiles + live f32 intermediates.
    return (2 * c_pad * (logits_itemsize + labels_itemsize)
            + _NUM_F32_TEMPS * c_pad * 4)


def _pick_tb(B: int, C: int, logits_itemsize: int, labels_itemsize: int,
             vmem_cap: int) -> int:
    """Pick a batch tile so the FULL per-step working set (double-buffered
    inputs + f32 intermediates) stays within ~1/4 of this chip's VMEM."""
    budget = vmem_cap // 4          # 32 MiB on v5e/v6e, 16 MiB on v7x
    rows = budget // max(1, _per_row_bytes(C, logits_itemsize, labels_itemsize))
    if rows >= B:
        return B
    return max(8, (rows // 8) * 8)


def _make_atloss_kernel(B: int, TB: int, C: int):
    """Kernel computing a per-tile partial sum of (loss1 + loss2)."""

    def kernel(logits_ref, labels_ref, out_ref):
        # Native-dtype tiles; cast of logits to f32 happens here (VPU).
        logits = logits_ref[...].astype(jnp.float32)       # (TB, C)
        labels_in = labels_ref[...]                        # native dtype

        col = jax.lax.broadcasted_iota(jnp.int32, (TB, C), dimension=1)
        is_col0 = col == 0

        # Positive labels, excluding the threshold column (labels[:,0] := 0).
        pos = jnp.logical_and(labels_in > 0, jnp.logical_not(is_col0))

        NEG = jnp.float32(-1e30)
        logit0 = logits[:, 0:1]                            # (TB, 1)

        # Per-mask maxes (XLU reductions; cheap).
        #   mask1 = positives U {col0};  mask2 = non-positives (col0 included)
        m1 = jnp.maximum(
            jnp.max(jnp.where(pos, logits, NEG), axis=-1, keepdims=True), logit0)
        m2 = jnp.max(jnp.where(pos, NEG, logits), axis=-1, keepdims=True)

        # Single full-width exp pass, shifted by the max of the mask each
        # element belongs to (col0 belongs to mask2 here; its mask1 term is
        # added back below with a (TB,1) exp).  logits - shift <= 0 always,
        # and each masked sum contains an exp(0)=1 term -> numerically safe.
        shift = jnp.where(pos, m1, m2)                     # (TB, C)
        e = jnp.exp(logits - shift)                        # (TB, C), one EUP pass

        sum1 = (jnp.sum(jnp.where(pos, e, 0.0), axis=-1, keepdims=True)
                + jnp.exp(logit0 - m1))                    # add col0 to mask1
        sum2 = jnp.sum(jnp.where(pos, 0.0, e), axis=-1, keepdims=True)

        lse1 = m1 + jnp.log(sum1)
        lse2 = m2 + jnp.log(sum2)

        # n_pos / lab_logit via col0-subtraction (keeps label-value semantics
        # without a full-width zeroing select).
        lab_f = labels_in.astype(jnp.float32)
        lab0 = lab_f[:, 0:1]
        n_pos = jnp.sum(lab_f, axis=-1, keepdims=True) - lab0
        lab_logit = jnp.sum(lab_f * logits, axis=-1, keepdims=True) - lab0 * logit0

        # loss1 = sum_j labels_j * (lse1 - logit_j);  loss2 = lse2 - logits[:, 0]
        row_loss = (n_pos * lse1 - lab_logit) + (lse2 - logit0)   # (TB, 1)

        # Mask rows past the true batch size (last partial tile).
        row = (pl.program_id(0) * TB
               + jax.lax.broadcasted_iota(jnp.int32, (TB, 1), dimension=0))
        row_loss = jnp.where(row < B, row_loss, 0.0)

        partial = jnp.sum(row_loss)                        # scalar f32
        # Lane-dense (1, 1, 128) store — no masked lane-partial stores.
        out_ref[...] = jnp.full(out_ref.shape, partial, dtype=jnp.float32)

    return kernel


def at_loss(logits: jnp.ndarray, labels: jnp.ndarray, *, tb: int | None = None) -> jnp.ndarray:
    """Pallas ATLoss forward. logits, labels: (B, C). Returns scalar f32.

    For best HBM-bound performance on v5e/v6e pass logits as bf16 and labels
    as int8/bool; the kernel casts to f32 internally.
    """
    B, C = logits.shape
    if labels.shape != (B, C):
        raise ValueError(f"labels shape {labels.shape} != logits shape {(B, C)}")

    li = logits.dtype.itemsize
    bi = labels.dtype.itemsize

    # Sublane granularity required for a non-full batch tile (dtype-packing aware).
    sub_mult = max(8, 32 // li, 32 // bi)

    cap = _vmem_capacity_bytes()
    if tb is None:
        tb = _pick_tb(B, C, li, bi, cap)
    if tb >= B:
        tb = B
    else:
        tb = max(sub_mult, (tb // sub_mult) * sub_mult)
        if tb >= B:
            tb = B

    # If everything landed in one tile, split into 2 whenever the sublane
    # granularity allows so "parallel" can shard across v7x's two TensorCores.
    if tb == B and B >= 2 * sub_mult:
        half = pl.cdiv(B, 2)
        tb = _round_up(half, sub_mult)
        if tb >= B:   # defensive; cannot split at this granularity
            tb = B

    num_tiles = pl.cdiv(B, tb)

    # Scoped-VMEM limit sized to the actual working set (with 2x headroom),
    # capped well under this chip's physical VMEM.
    ws = tb * _per_row_bytes(C, li, bi)
    vmem_limit = int(min(cap * 3 // 4, max(32 << 20, 2 * ws)))

    partials = pl.pallas_call(
        _make_atloss_kernel(B, tb, C),
        out_shape=jax.ShapeDtypeStruct((num_tiles, 1, 128), jnp.float32),
        grid=(num_tiles,),
        in_specs=[
            pl.BlockSpec((tb, C), lambda i: (i, 0)),
            pl.BlockSpec((tb, C), lambda i: (i, 0)),
        ],
        out_specs=pl.BlockSpec((1, 1, 128), lambda i: (i, 0, 0)),
        compiler_params=pltpu.CompilerParams(
            dimension_semantics=("parallel",),
            vmem_limit_bytes=vmem_limit,
        ),
    )(logits, labels)

    # Final mean over the true batch size, in f32, outside the kernel.
    return jnp.sum(partials[:, 0, 0]) / jnp.float32(B)


def _at_loss_ref(logits, labels):
    """Pure-JAX reference mirroring the PyTorch forward."""
    logits = logits.astype(jnp.float32)
    labels = labels.astype(jnp.float32)
    th_label = jnp.zeros_like(labels).at[:, 0].set(1.0)
    labels = labels.at[:, 0].set(0.0)
    p_mask = labels + th_label
    n_mask = 1.0 - labels
    logit1 = logits - (1.0 - p_mask) * 1e30
    logit2 = logits - (1.0 - n_mask) * 1e30
    loss1 = -jnp.sum(jax.nn.log_softmax(logit1, axis=-1) * labels, axis=1)
    loss2 = -jnp.sum(jax.nn.log_softmax(logit2, axis=-1) * th_label, axis=1)
    return jnp.mean(loss1 + loss2)


# TODO(synk): ATLoss.get_label (inference-time label decoding with top-k) is not
#             part of the forward pass and is not implemented here.


if __name__ == "__main__":
    key = jax.random.PRNGKey(0)

    # --- Test 1: f32 inputs, C not a multiple of 128, B not a multiple of the
    #             tile -> exercises batch tiling + partial-tile row masking. ---
    B1, C1 = 28, 97
    k1, k2, k3, k4 = jax.random.split(key, 4)
    logits1 = jax.random.normal(k1, (B1, C1), dtype=jnp.float32)
    labels1 = (jax.random.uniform(k2, (B1, C1)) < 0.05).astype(jnp.float32)

    loss1 = at_loss(logits1, labels1, tb=8)      # grid = 4, last tile partial
    jax.block_until_ready(loss1)
    ref1 = _at_loss_ref(logits1, labels1)
    assert jnp.allclose(loss1, ref1, rtol=1e-4, atol=1e-4), (loss1, ref1)

    # --- Test 2: native low-precision inputs (bf16 logits, int8 labels) pass
    #             straight through; default tile selection auto-splits the
    #             batch into 2 tiles (v7x dual-TC path). ---
    B2, C2 = 64, 97
    logits2 = jax.random.normal(k3, (B2, C2), dtype=jnp.bfloat16)
    labels2 = (jax.random.uniform(k4, (B2, C2)) < 0.05).astype(jnp.int8)

    loss2 = at_loss(logits2, labels2)            # default tile selection
    jax.block_until_ready(loss2)
    ref2 = _at_loss_ref(logits2.astype(jnp.float32), labels2.astype(jnp.float32))
    assert jnp.allclose(loss2, ref2, rtol=1e-3, atol=1e-3), (loss2, ref2)

    print("KERNEL_OK")
</pallas_src>

<mosaic_0001>
module attributes {stable_mosaic.version = 11 : i64} {
  func.func @kernel(%arg0: i32, %arg1: memref<8x97xf32, #tpu.memory_space<vmem>>, %arg2: memref<8x97xf32, #tpu.memory_space<vmem>>, %arg3: memref<1x1x128xf32, #tpu.memory_space<vmem>>) attributes {dimension_semantics = [#tpu.dimension_semantics<parallel>], iteration_bounds = array<i64: 4>, scalar_prefetch = 0 : i64, scratch_operands = 0 : i64, tpu.core_type = #tpu.core_type<tc>, window_params = [{transform_indices = @transform_0, window_bounds = array<i64: 8, 97>}, {transform_indices = @transform_1, window_bounds = array<i64: 8, 97>}, {transform_indices = @transform_2, window_bounds = array<i64: 1, 1, 128>}]} {
    %c0 = arith.constant 0 : index
    %c0_0 = arith.constant 0 : index
    %0 = vector.load %arg1[%c0, %c0_0] : memref<8x97xf32, #tpu.memory_space<vmem>>, vector<8x97xf32>
    %c0_1 = arith.constant 0 : index
    %c0_2 = arith.constant 0 : index
    %1 = vector.load %arg2[%c0_1, %c0_2] : memref<8x97xf32, #tpu.memory_space<vmem>>, vector<8x97xf32>
    %2 = tpu.iota {dimensions = array<i32: 1>} : vector<8x97xi32>
    %c0_i32 = arith.constant 0 : i32
    %3 = vector.broadcast %c0_i32 : i32 to vector<8x97xi32>
    %4 = arith.cmpi eq, %2, %3 : vector<8x97xi32>
    %cst = arith.constant 0.000000e+00 : f32
    %5 = vector.broadcast %cst : f32 to vector<8x97xf32>
    %6 = arith.cmpf ogt, %1, %5 : vector<8x97xf32>
    %cst_3 = arith.constant dense<true> : vector<8x97xi1>
    %7 = arith.xori %4, %cst_3 : vector<8x97xi1>
    %8 = arith.andi %6, %7 : vector<8x97xi1>
    %9 = vector.extract_strided_slice %0 {offsets = [0, 0], sizes = [8, 1], strides = [1, 1]} : vector<8x97xf32> to vector<8x1xf32>
    %cst_4 = arith.constant -1.000000e+30 : f32
    %10 = vector.broadcast %cst_4 : f32 to vector<8x97xf32>
    %11 = arith.select %8, %0, %10 : vector<8x97xi1>, vector<8x97xf32>
    %cst_5 = arith.constant dense<0xFF800000> : vector<8xf32>
    %12 = vector.multi_reduction <maximumf>, %11, %cst_5 [1] : vector<8x97xf32> to vector<8xf32>
    %13 = vector.shape_cast %12 : vector<8xf32> to vector<8x1xf32>
    %14 = arith.maximumf %13, %9 : vector<8x1xf32>
    %cst_6 = arith.constant -1.000000e+30 : f32
    %15 = vector.broadcast %cst_6 : f32 to vector<8x97xf32>
    %16 = arith.select %8, %15, %0 : vector<8x97xi1>, vector<8x97xf32>
    %cst_7 = arith.constant dense<0xFF800000> : vector<8xf32>
    %17 = vector.multi_reduction <maximumf>, %16, %cst_7 [1] : vector<8x97xf32> to vector<8xf32>
    %18 = vector.shape_cast %17 : vector<8xf32> to vector<8x1xf32>
    %19 = vector.shape_cast %14 : vector<8x1xf32> to vector<8x1xf32>
    %20 = vector.broadcast %19 : vector<8x1xf32> to vector<8x97xf32>
    %21 = vector.shape_cast %18 : vector<8x1xf32> to vector<8x1xf32>
    %22 = vector.broadcast %21 : vector<8x1xf32> to vector<8x97xf32>
    %23 = arith.select %8, %20, %22 : vector<8x97xi1>, vector<8x97xf32>
    %24 = arith.subf %0, %23 : vector<8x97xf32>
    %25 = math.exp %24 : vector<8x97xf32>
    %cst_8 = arith.constant 0.000000e+00 : f32
    %26 = vector.broadcast %cst_8 : f32 to vector<8x97xf32>
    %27 = arith.select %8, %25, %26 : vector<8x97xi1>, vector<8x97xf32>
    %cst_9 = arith.constant dense<0.000000e+00> : vector<8xf32>
    %28 = vector.multi_reduction <add>, %27, %cst_9 [1] : vector<8x97xf32> to vector<8xf32>
    %29 = vector.shape_cast %28 : vector<8xf32> to vector<8x1xf32>
    %30 = arith.subf %9, %14 : vector<8x1xf32>
    %31 = math.exp %30 : vector<8x1xf32>
    %32 = arith.addf %29, %31 : vector<8x1xf32>
    %cst_10 = arith.constant 0.000000e+00 : f32
    %33 = vector.broadcast %cst_10 : f32 to vector<8x97xf32>
    %34 = arith.select %8, %33, %25 : vector<8x97xi1>, vector<8x97xf32>
    %cst_11 = arith.constant dense<0.000000e+00> : vector<8xf32>
    %35 = vector.multi_reduction <add>, %34, %cst_11 [1] : vector<8x97xf32> to vector<8xf32>
    %36 = vector.shape_cast %35 : vector<8xf32> to vector<8x1xf32>
    %37 = math.log %32 : vector<8x1xf32>
    %38 = arith.addf %14, %37 : vector<8x1xf32>
    %39 = math.log %36 : vector<8x1xf32>
    %40 = arith.addf %18, %39 : vector<8x1xf32>
    %41 = vector.extract_strided_slice %1 {offsets = [0, 0], sizes = [8, 1], strides = [1, 1]} : vector<8x97xf32> to vector<8x1xf32>
    %cst_12 = arith.constant dense<0.000000e+00> : vector<8xf32>
    %42 = vector.multi_reduction <add>, %1, %cst_12 [1] : vector<8x97xf32> to vector<8xf32>
    %43 = vector.shape_cast %42 : vector<8xf32> to vector<8x1xf32>
    %44 = arith.subf %43, %41 : vector<8x1xf32>
    %45 = arith.mulf %1, %0 : vector<8x97xf32>
    %cst_13 = arith.constant dense<0.000000e+00> : vector<8xf32>
    %46 = vector.multi_reduction <add>, %45, %cst_13 [1] : vector<8x97xf32> to vector<8xf32>
    %47 = vector.shape_cast %46 : vector<8xf32> to vector<8x1xf32>
    %48 = arith.mulf %41, %9 : vector<8x1xf32>
    %49 = arith.subf %47, %48 : vector<8x1xf32>
    %50 = arith.mulf %44, %38 : vector<8x1xf32>
    %51 = arith.subf %50, %49 : vector<8x1xf32>
    %52 = arith.subf %40, %9 : vector<8x1xf32>
    %53 = arith.addf %51, %52 : vector<8x1xf32>
    %c8_i32 = arith.constant 8 : i32
    %54 = arith.muli %arg0, %c8_i32 : i32
    %55 = tpu.iota {dimensions = array<i32: 0>} : vector<8x1xi32>
    %56 = vector.broadcast %54 : i32 to vector<8x1xi32>
    %57 = arith.addi %56, %55 : vector<8x1xi32>
    %c28_i32 = arith.constant 28 : i32
    %58 = vector.broadcast %c28_i32 : i32 to vector<8x1xi32>
    %59 = arith.cmpi slt, %57, %58 : vector<8x1xi32>
    %cst_14 = arith.constant 0.000000e+00 : f32
    %60 = vector.broadcast %cst_14 : f32 to vector<8x1xf32>
    %61 = arith.select %59, %53, %60 : vector<8x1xi1>, vector<8x1xf32>
    %62 = vector.shape_cast %61 : vector<8x1xf32> to vector<1x8x1xf32>
    %cst_15 = arith.constant dense<0.000000e+00> : vector<1xf32>
    %63 = vector.multi_reduction <add>, %62, %cst_15 [1, 2] : vector<1x8x1xf32> to vector<1xf32>
    %64 = vector.shape_cast %63 : vector<1xf32> to vector<1x1x1xf32>
    %65 = vector.extract %64[0, 0, 0] : f32 from vector<1x1x1xf32>
    %66 = vector.broadcast %65 : f32 to vector<1x1x128xf32>
    %c0_16 = arith.constant 0 : index
    %c0_17 = arith.constant 0 : index
    %c0_18 = arith.constant 0 : index
    %67 = vector.load %arg3[%c0_16, %c0_17, %c0_18] : memref<1x1x128xf32, #tpu.memory_space<vmem>>, vector<1x1x128xf32>
    tpu.vector_store %arg3[%c0_16, %c0_17, %c0_18], %66 {strides = array<i32>} : memref<1x1x128xf32, #tpu.memory_space<vmem>>, vector<1x1x128xf32>,
    return
  }
  func.func @transform_0(%arg0: i32) -> (i32, i32) {
    %c0_i32 = arith.constant 0 : i32
    %c0_i32_0 = arith.constant 0 : i32
    return %arg0, %c0_i32 : i32, i32
  }
  func.func @transform_1(%arg0: i32) -> (i32, i32) {
    %c0_i32 = arith.constant 0 : i32
    %c0_i32_0 = arith.constant 0 : i32
    return %arg0, %c0_i32 : i32, i32
  }
  func.func @transform_2(%arg0: i32) -> (i32, i32, i32) {
    %c0_i32 = arith.constant 0 : i32
    %c0_i32_0 = arith.constant 0 : i32
    %c0_i32_1 = arith.constant 0 : i32
    return %arg0, %c0_i32, %c0_i32_0 : i32, i32, i32
  }
}

</mosaic_0001>

<llo_original>
// kernel: tpu_custom_call.1
$region0: #{tpu_custom_call.1}
  #allocation0 [shape = 'u32[]', space=smem, size = 0x4, offset = 0x4, fixed_abs, tag = 'smem constant byte address 0x4 - core index']
  #allocation1 [shape = 'u32[72,128]{1,0:T(1,128)}', space=vmem, size = 0x9000, scoped, tag = 'internal scratch']
  %s0 = inlined_call_operand.hbm [shape: f32[28,97], index: 0, kind: input, shape index: {}]
  %s1 = inlined_call_operand.hbm [shape: f32[28,97], index: 1, kind: input, shape index: {}]
  %s2 = inlined_call_operand.hbm [shape: f32[4,1,128], index: 2, kind: output, shape index: {}]
  %s3 = sld [smem:[#allocation0]]
  $region49: #{tpu_custom_call.1} parent=0
    _
  %s5 = ssub.s32 1, %s3
  %s6 = scalar_select 0, %s5, %s3
  $region1: #{tpu_custom_call.1} parent=0
    #allocation2 [shape = 'u8[8192]{0}', space=vmem, size = 0x2000, scoped, tag = 'input window, operand 0']
    #allocation3 [shape = 's32[2]{0}', space=sflag, size = 0x8, scoped, tag = 'scoped memory for tpu_custom_call.1']
    #allocation4 [shape = 's32[2]{0}', space=sflag, size = 0x8, scoped, tag = 'scoped memory for tpu_custom_call.1']
    #allocation5 [shape = 'u8[8192]{0}', space=vmem, size = 0x2000, scoped, tag = 'input window, operand 1']
    #allocation6 [shape = 's32[2]{0}', space=sflag, size = 0x8, scoped, tag = 'scoped memory for tpu_custom_call.1']
    #allocation7 [shape = 'u8[1024]{0}', space=vmem, size = 0x400, scoped, tag = 'output window, operand 0']
    %7 = vsyncpa [#allocation3], 0
    %s8 = scalar_lea.sflag [#allocation3], 1
    %9 = vsyncpa %s8, 0
    %10 = vsyncpa [#allocation6], 0
    %s11 = scalar_lea.sflag [#allocation6], 1
    %12 = vsyncpa %s11, 0
    %13 = vsyncpa [#allocation4], 0
    %s14 = scalar_lea.sflag [#allocation4], 1
    %15 = vsyncpa %s14, 0
    loop: start=0, step=1, limit=6
    $region2: #{tpu_custom_call.1} parent=1 // loop_pre_header
      _
    $region3: #{tpu_custom_call.1} parent=1 // loop_header
      %s17 = sphi 0, %s21
      %p18 = scmp.ge.s32.totalorder %s17, 6
      %s27 = sphi 0, %s29
      %s30 = sphi 0, %s27
      %s31 = sphi 0, %s30
      %s47 = sphi 0, %s31
      %s53 = sphi 0, %s55
      %s56 = sphi 0, %s53
      %s57 = sphi 0, %s56
      %s73 = sphi 0, %s57
      %s79 = sphi 0, %s81
      %s82 = sphi 0, %s79
      %s83 = sphi 0, %s82
      %s99 = sphi 0, %s83
    $region4: #{tpu_custom_call.1} parent=1 // loop_header_branch
      %20 = sbr.rel (%p18) target = $region8
    $region5: #{tpu_custom_call.1} parent=1 // loop_body
      %s22 = ssub.s32 %s17, 1
      %s23 = ssub.s32 %s17, 2
      %s24 = sadd.s32 %s17, 1
      %s25 = ssub.s32 %s17, %s24
      %p26 = scmp.eq.s32.totalorder %s25, 0
      %s28 = sadd.s32 %s27, 1
      %s29 = scalar_select %p26, %s27, %s28
      %p32 = pneg %p26
      %p33 = scmp.eq.s32.totalorder %s17, 3
      %p34 = por %p32, %p33
      %p35 = scmp.ne.s32.totalorder %s27, %s30
      %p36 = scmp.eq.s32.totalorder %s17, 0
      %p37 = por %p35, %p36
      %p38 = scmp.ne.s32.totalorder %s27, %s30
      %p39 = scmp.eq.s32.totalorder %s22, 3
      %p40 = por %p38, %p39
      %p41 = scmp.ne.s32.totalorder %s30, %s31
      %p42 = scmp.eq.s32.totalorder %s22, 0
      %p43 = por %p41, %p42
      %p44 = scmp.ne.s32.totalorder %s30, %s31
      %p45 = scmp.eq.s32.totalorder %s23, 3
      %p46 = por %p44, %p45
      %p48 = scmp.ne.s32.totalorder %s31, %s47
      %p49 = scmp.eq.s32.totalorder %s23, 0
      %p50 = por %p48, %p49
      %s51 = ssub.s32 %s17, %s24
      %p52 = scmp.eq.s32.totalorder %s51, 0
      %s54 = sadd.s32 %s53, 1
      %s55 = scalar_select %p52, %s53, %s54
      %p58 = pneg %p52
      %p59 = scmp.eq.s32.totalorder %s17, 3
      %p60 = por %p58, %p59
      %p61 = scmp.ne.s32.totalorder %s53, %s56
      %p62 = scmp.eq.s32.totalorder %s17, 0
      %p63 = por %p61, %p62
      %p64 = scmp.ne.s32.totalorder %s53, %s56
      %p65 = scmp.eq.s32.totalorder %s22, 3
      %p66 = por %p64, %p65
      %p67 = scmp.ne.s32.totalorder %s56, %s57
      %p68 = scmp.eq.s32.totalorder %s22, 0
      %p69 = por %p67, %p68
      %p70 = scmp.ne.s32.totalorder %s56, %s57
      %p71 = scmp.eq.s32.totalorder %s23, 3
      %p72 = por %p70, %p71
      %p74 = scmp.ne.s32.totalorder %s57, %s73
      %p75 = scmp.eq.s32.totalorder %s23, 0
      %p76 = por %p74, %p75
      %s77 = ssub.s32 %s17, %s24
      %p78 = scmp.eq.s32.totalorder %s77, 0
      %s80 = sadd.s32 %s79, 1
      %s81 = scalar_select %p78, %s79, %s80
      %p84 = pneg %p78
      %p85 = scmp.eq.s32.totalorder %s17, 3
      %p86 = por %p84, %p85
      %p87 = scmp.ne.s32.totalorder %s79, %s82
      %p88 = scmp.eq.s32.totalorder %s17, 0
      %p89 = por %p87, %p88
      %p90 = scmp.ne.s32.totalorder %s79, %s82
      %p91 = scmp.eq.s32.totalorder %s22, 3
      %p92 = por %p90, %p91
      %p93 = scmp.ne.s32.totalorder %s82, %s83
      %p94 = scmp.eq.s32.totalorder %s22, 0
      %p95 = por %p93, %p94
      %p96 = scmp.ne.s32.totalorder %s82, %s83
      %p97 = scmp.eq.s32.totalorder %s23, 3
      %p98 = por %p96, %p97
      %p100 = scmp.ne.s32.totalorder %s83, %s99
      %p101 = scmp.eq.s32.totalorder %s23, 0
      %p102 = por %p100, %p101
      %p103 = scmp.le.s32.totalorder 1, %s17
      %p104 = scmp.lt.s32.totalorder %s17, 5
      %p105 = pnand %p103, %p104
      %p106 = pneg %p105
      // Predicated region
      $region9: #{tpu_custom_call.1} parent=5 // pred_check
        _
      $region10: #{tpu_custom_call.1} parent=5 // pred_check_branch
        %108 = sbr.rel (%p105) target = $region12
      $region11: #{tpu_custom_call.1} parent=5 // pred_region
        %s109 = ssub.s32 %s17, 1
      $region12: #{tpu_custom_call.1} parent=5 // pred_fallthru
        _
      %p110 = scmp.lt.s32.totalorder %s17, 4
      // Predicated region
      $region13: #{tpu_custom_call.1} parent=5 // pred_check
        %p111 = pneg %p110
      $region14: #{tpu_custom_call.1} parent=5 // pred_check_branch
        %113 = sbr.rel (%p111) target = $region16
      $region15: #{tpu_custom_call.1} parent=5 // pred_region
        // Predicated region
        $region17: #{tpu_custom_call.1} parent=15 // pred_check
          %p114 = pneg %p37
        $region18: #{tpu_custom_call.1} parent=15 // pred_check_branch
          %116 = sbr.rel (%p114) target = $region20
        $region19: #{tpu_custom_call.1} parent=15 // pred_region
          %s117 = sand.u32 %s27, 1
          %s118 = scalar_lea.sflag [#allocation3], %s117
          %s119 = sand.u32 %s27, 1
          %s120 = smul.addr %s119, 8
          %s121 = scalar_lea.vmem [#allocation2], %s120
          %123 = vsyncadd %s118, 0
          %s124 = smul.addr %s17, 8
          %s125 = scalar_lea.hbm %s0, %s124
          %s127 = sshll.u32 %s125, 4
          %s128 = int_to_ptr.hbm [resolvable:$true] %s127
          %s129 = sshll.u32 %s121, 4
          %s130 = int_to_ptr.vmem [resolvable:$true] %s129
          %132 = dma.hbm_to_vmem [thread:$0]  %s128, 128, %s130, %s118
        $region20: #{tpu_custom_call.1} parent=15 // pred_fallthru
          _
        // Predicated region
        $region21: #{tpu_custom_call.1} parent=15 // pred_check
          %p133 = pneg %p63
        $region22: #{tpu_custom_call.1} parent=15 // pred_check_branch
          %135 = sbr.rel (%p133) target = $region24
        $region23: #{tpu_custom_call.1} parent=15 // pred_region
          %s136 = sand.u32 %s53, 1
          %s137 = scalar_lea.sflag [#allocation6], %s136
          %s138 = sand.u32 %s53, 1
          %s139 = smul.addr %s138, 8
          %s140 = scalar_lea.vmem [#allocation5], %s139
          %142 = vsyncadd %s137, 0
          %s143 = smul.addr %s17, 8
          %s144 = scalar_lea.hbm %s1, %s143
          %s146 = sshll.u32 %s144, 4
          %s147 = int_to_ptr.hbm [resolvable:$true] %s146
          %s148 = sshll.u32 %s140, 4
          %s149 = int_to_ptr.vmem [resolvable:$true] %s148
          %151 = dma.hbm_to_vmem [thread:$0]  %s147, 128, %s149, %s137
        $region24: #{tpu_custom_call.1} parent=15 // pred_fallthru
          _
      $region16: #{tpu_custom_call.1} parent=5 // pred_fallthru
        _
      %p152 = scmp.le.s32.totalorder 1, %s17
      %p153 = scmp.lt.s32.totalorder %s17, 5
      %p154 = pnand %p152, %p153
      %p155 = pneg %p154
      // Predicated region
      $region25: #{tpu_custom_call.1} parent=5 // pred_check
        _
      $region26: #{tpu_custom_call.1} parent=5 // pred_check_branch
        %157 = sbr.rel (%p154) target = $region28
      $region27: #{tpu_custom_call.1} parent=5 // pred_region
        %s158 = ssub.s32 %s17, 1
        %s159 = sand.u32 %s30, 1
        %s160 = scalar_lea.sflag [#allocation3], %s159
        %s161 = sand.u32 %s30, 1
        %s162 = smul.addr %s161, 8
        %s163 = scalar_lea.vmem [#allocation2], %s162
        // Predicated region
        $region29: #{tpu_custom_call.1} parent=27 // pred_check
          %p164 = pneg %p43
        $region30: #{tpu_custom_call.1} parent=27 // pred_check_branch
          %166 = sbr.rel (%p164) target = $region32
        $region31: #{tpu_custom_call.1} parent=27 // pred_region
          %168 = dma.done %s160, 128
        $region32: #{tpu_custom_call.1} parent=27 // pred_fallthru
          _
        %s169 = sand.u32 %s56, 1
        %s170 = scalar_lea.sflag [#allocation6], %s169
        %s171 = sand.u32 %s56, 1
        %s172 = smul.addr %s171, 8
        %s173 = scalar_lea.vmem [#allocation5], %s172
        // Predicated region
        $region33: #{tpu_custom_call.1} parent=27 // pred_check
          %p174 = pneg %p69
        $region34: #{tpu_custom_call.1} parent=27 // pred_check_branch
          %176 = sbr.rel (%p174) target = $region36
        $region35: #{tpu_custom_call.1} parent=27 // pred_region
          %178 = dma.done %s170, 128
        $region36: #{tpu_custom_call.1} parent=27 // pred_fallthru
          _
        %s179 = sand.u32 %s30, 1
        %s180 = scalar_lea.sflag [#allocation3], %s179
        %s181 = sand.u32 %s30, 1
        %s182 = smul.addr %s181, 8
        %s183 = scalar_lea.vmem [#allocation2], %s182
        %p184 = pneg %p43
        %p185 = pneg %p40
        %s186 = sand.u32 %s56, 1
        %s187 = scalar_lea.sflag [#allocation6], %s186
        %s188 = sand.u32 %s56, 1
        %s189 = smul.addr %s188, 8
        %s190 = scalar_lea.vmem [#allocation5], %s189
        %p191 = pneg %p69
        %p192 = pneg %p66
        %p193 = pneg %p95
        %p194 = pneg %p92
        %s195 = sand.u32 %s82, 1
        %s196 = scalar_lea.sflag [#allocation4], %s195
        %s197 = sand.u32 %s82, 1
        %s198 = scalar_lea.vmem [#allocation7], %s197
        %v199 = vld [vmem:[%s163] sm:$0xff]
        %v200 = vld [vmem:[%s173] sm:$0xff]
        %v201 = vlaneseq
        %v202 = vand.u32 %v201, 127
        %vm203 = vcmp.eq.s32.totalorder %v202, 0
        %vm204 = vcmp.gt.f32.partialorder %v200, 0.0
        %vm205 = vmxor %vm203, 1
        %vm206 = vmand %vm204, %vm205
        %v207 = vsel %vm206, %v199, -1e+30
        %vm208 = vcmask 793600
        %v209 = vsel %vm208, %v207, -inf
        %210 = vmax.xlane.f32.xlu0 %v209
        %v211 = vpop.xlane.xlu0 %210
        %v212 = vmax.f32 %v211, %v199
        %v213 = vsel %vm206, -1e+30, %v199
        %v214 = vsel %vm208, %v213, -inf
        %215 = vmax.xlane.f32.xlu0 %v214
        %v216 = vpop.xlane.xlu0 %215
        %218 = vset.pattern.permute.xlu0 0
        %219 = vperm.xlu0 %218, %v212
        %v220 = vpop.permute.xlu0 %219
        %v222 = vsel %vm206, %v220, %v216
        %v223 = vsub.f32 %v199, %v222
        %v224 = vmul.f32 %v223, 1.442695
        %v225 = vpow.pop %v224
        %v226 = vsel %vm206, %v225, 0.0
        %v227 = vsel %vm208, %v226, 0.0
        %228 = vadd.xlane.f32.xlu0 %v227
        %v229 = vpop.xlane.xlu0 %228
        %v230 = vsub.f32 %v199, %v212
        %v231 = vmul.f32 %v230, 1.442695
        %v232 = vpow.pop %v231
        %v233 = vadd.f32 %v229, %v232
        %v234 = vsel %vm206, 0.0, %v225
        %v235 = vsel %vm208, %v234, 0.0
        %236 = vadd.xlane.f32.xlu0 %v235
        %v237 = vpop.xlane.xlu0 %236
        %v238 = vlog2.pop %v233
        %v239 = vmul.f32 %v238, 0.6931472
        %v240 = vadd.f32 %v212, %v239
        %v241 = vlog2.pop %v237
        %v242 = vmul.f32 %v241, 0.6931472
        %v243 = vadd.f32 %v216, %v242
        %v244 = vsel %vm208, %v200, 0.0
        %245 = vadd.xlane.f32.xlu0 %v244
        %v246 = vpop.xlane.xlu0 %245
        %v247 = vsub.f32 %v246, %v200
        %v248 = vmul.f32 %v200, %v199
        %v249 = vsel %vm208, %v248, 0.0
        %250 = vadd.xlane.f32.xlu0 %v249
        %v251 = vpop.xlane.xlu0 %250
        %v252 = vsub.f32 %v251, %v248
        %v253 = vmul.f32 %v247, %v240
        %v254 = vsub.f32 %v253, %v252
        %v255 = vsub.f32 %v243, %v199
        %v256 = vadd.f32 %v254, %v255
        %s257 = smul.u32 %s22, 8
        %v258 = vlaneseq
        %v259 = vshrl.u32 %v258, 7
        %v260 = vstv %s257
        %v261 = vadd.s32 %v260, %v259
        %vm262 = vcmp.lt.s32.totalorder %v261, 28
        %v263 = vsel %vm262, %v256, 0.0
        %vm264 = vcmask 7168
        %v265 = vsel %vm264, %v263, 0.0
        %266 = vadd.xlane.f32.xlu0 %v265
        %v267 = vpop.xlane.xlu0 %266
        %v268 = vrot.slane %v267, 4
        %v269 = vadd.f32 %v267, %v268
        %v270 = vrot.slane %v269, 2
        %v271 = vadd.f32 %v269, %v270
        %v272 = vrot.slane %v271, 1
        %v273 = vadd.f32 %v271, %v272
        %s274 = vtos %v273
        %v275 = vstv %s274
        %276 = vst [vmem:[%s198] sm:$0x1] %v275
        %s277 = sand.u32 %s82, 1
        %s278 = scalar_lea.sflag [#allocation4], %s277
        %s279 = sand.u32 %s82, 1
        %s280 = scalar_lea.vmem [#allocation7], %s279
        // Predicated region
        $region37: #{tpu_custom_call.1} parent=27 // pred_check
          %p281 = pneg %p92
        $region38: #{tpu_custom_call.1} parent=27 // pred_check_branch
          %283 = sbr.rel (%p281) target = $region40
        $region39: #{tpu_custom_call.1} parent=27 // pred_region
          %285 = vsyncadd %s278, 0
          %s286 = scalar_lea.hbm %s2, %s22
          %s288 = sshll.u32 %s280, 4
          %s289 = int_to_ptr.vmem [resolvable:$true] %s288
          %s290 = sshll.u32 %s286, 4
          %s291 = int_to_ptr.hbm [resolvable:$true] %s290
          %293 = dma.vmem_to_hbm [thread:$0]  %s289, 16, %s291, %s278
        $region40: #{tpu_custom_call.1} parent=27 // pred_fallthru
          _
      $region28: #{tpu_custom_call.1} parent=5 // pred_fallthru
        _
      %p294 = scmp.le.s32.totalorder 2, %s17
      // Predicated region
      $region41: #{tpu_custom_call.1} parent=5 // pred_check
        %p295 = pneg %p294
      $region42: #{tpu_custom_call.1} parent=5 // pred_check_branch
        %297 = sbr.rel (%p295) target = $region44
      $region43: #{tpu_custom_call.1} parent=5 // pred_region
        %s298 = ssub.s32 %s17, 2
        // Predicated region
        $region45: #{tpu_custom_call.1} parent=43 // pred_check
          %p299 = pneg %p98
        $region46: #{tpu_custom_call.1} parent=43 // pred_check_branch
          %301 = sbr.rel (%p299) target = $region48
        $region47: #{tpu_custom_call.1} parent=43 // pred_region
          %s302 = sand.u32 %s83, 1
          %s303 = scalar_lea.sflag [#allocation4], %s302
          %s304 = sand.u32 %s83, 1
          %s305 = scalar_lea.vmem [#allocation7], %s304
          %307 = dma.done %s303, 16
        $region48: #{tpu_custom_call.1} parent=43 // pred_fallthru
          _
      $region44: #{tpu_custom_call.1} parent=5 // pred_fallthru
        _
    $region6: #{tpu_custom_call.1} parent=1 // loop_footer
      %s21 = sadd.s32 1, %s17
    $region7: #{tpu_custom_call.1} parent=1 // loop_footer_branch
      %16 = sbr.rel target = $region3
    $region8: #{tpu_custom_call.1} parent=1 // loop_exit
      _
    %308 = vsyncpa [#allocation3], 1
    %s309 = scalar_lea.sflag [#allocation3], 1
    %310 = vsyncpa %s309, 1
    %311 = vsyncpa [#allocation6], 1
    %s312 = scalar_lea.sflag [#allocation6], 1
    %313 = vsyncpa %s312, 1
    %314 = vsyncpa [#allocation4], 1
    %s315 = scalar_lea.sflag [#allocation4], 1
    %316 = vsyncpa %s315, 1

</llo_original>
